<compile_context>
chip_gen: v7x
topology: tpu7x:2x2x1
jax: 0.10.0
libtpu: 0.0.40
codegen_flags: <defaults>
</compile_context>

<pallas_src>
import jax
import jax.numpy as jnp
from jax.experimental import pallas as pl
from jax.experimental.pallas import tpu as pltpu
import numpy as np

_LANE = 128
_MAX_TB = 32768  # lane-tile cap: 4 inputs * 2 bufs * 128 KiB + out 2*256 KiB ~= 1.5 MiB VMEM


# ----------------------------------------------------------------------------- kernel
def _backtrack_kernel(ent_ref, max_ref, mean_ref, pm_ref,
                      w1_ref, b1_ref, w2_ref, b2_ref, o_ref):
    """Transposed (features, batch) layout.

    ent/max/mean/pm : (1, TB)  VMEM  -- one feature row each, batch on lanes
    w1 : (4, 4) SMEM   b1 : (1, 4) SMEM   (BN folded in host-side)
    w2 : (4, 2) SMEM   b2 : (1, 2) SMEM
    o  : (2, TB) VMEM
    """
    x = (ent_ref[...], max_ref[...], mean_ref[...], pm_ref[...])   # 4 x (1, TB) f32

    # Layer 1 (BN pre-folded): h_j = sigmoid(b1_j + sum_k w1[k, j] * x_k)   (VPU FMAs)
    h = []
    for j in range(4):
        acc = x[0] * w1_ref[0, j] + b1_ref[0, j]
        for k in range(1, 4):
            acc = acc + x[k] * w1_ref[k, j]
        h.append(jax.nn.sigmoid(acc))                               # exp -> EUP slot

    # Layer 2: y_i = relu(b2_i + sum_j w2[j, i] * h_j)
    for i in range(2):
        acc = h[0] * w2_ref[0, i] + b2_ref[0, i]
        for j in range(1, 4):
            acc = acc + h[j] * w2_ref[j, i]
        o_ref[pl.ds(i, 1), :] = jnp.maximum(acc, 0.0)               # ReLU, lane-dense store


# ----------------------------------------------------------------------------- wrapper
def backtrack_button(ent_logit, max_logit, mean_logit, pm, params, eps=1e-5):
    """Fused BatchNorm1d(4) -> Linear(4,4) -> Sigmoid -> Linear(4,2) -> ReLU."""
    B = ent_logit.shape[0]
    f32 = jnp.float32

    # features-on-sublanes / batch-on-lanes: each input is a (1, B) row (reshape = metadata only)
    rows = [jnp.asarray(v, f32).reshape(1, B)
            for v in (ent_logit, max_logit, mean_logit, pm)]

    # ---- fold eval-mode BatchNorm into the first Linear (host-side, once) ----
    scale = params["bn_gamma"] / jnp.sqrt(params["bn_var"] + eps)        # (4,)
    shift = params["bn_beta"] - params["bn_mean"] * scale                # (4,)
    w1_io = params["w1"].astype(f32).T                                   # (4, 4) in x out
    w1_eff = scale[:, None] * w1_io                                      # (4, 4)
    b1_eff = (params["b1"] + shift @ w1_io).reshape(1, 4).astype(f32)    # (1, 4)
    w2_io = params["w2"].astype(f32).T                                   # (4, 2) in x out
    b2 = params["b2"].reshape(1, 2).astype(f32)                          # (1, 2)

    # ---- batch tiling along the lane axis ----
    if B < _LANE:
        tb = B                              # block == full array dim (allowed for any size)
    else:
        tb = min(_MAX_TB, (B // _LANE) * _LANE)   # multiple of 128; partial last tile is masked
    grid = (pl.cdiv(B, tb),)

    vec_spec = pl.BlockSpec((1, tb), lambda i: (0, i))
    smem = pltpu.MemorySpace.SMEM
    const2d = lambda i: (0, 0)

    out = pl.pallas_call(
        _backtrack_kernel,
        out_shape=jax.ShapeDtypeStruct((2, B), f32),
        grid=grid,
        in_specs=[vec_spec, vec_spec, vec_spec, vec_spec,
                  pl.BlockSpec((4, 4), const2d, memory_space=smem),   # w1 (resident)
                  pl.BlockSpec((1, 4), const2d, memory_space=smem),   # b1 (resident)
                  pl.BlockSpec((4, 2), const2d, memory_space=smem),   # w2 (resident)
                  pl.BlockSpec((1, 2), const2d, memory_space=smem)],  # b2 (resident)
        out_specs=pl.BlockSpec((2, tb), lambda i: (0, i)),
        compiler_params=pltpu.CompilerParams(dimension_semantics=("parallel",)),
    )(*rows, w1_eff, b1_eff, w2_io, b2)

    return out.T                                                         # (B, 2)


# ----------------------------------------------------------------------------- pure-JAX reference
def reference(ent_logit, max_logit, mean_logit, pm, p, eps=1e-5):
    x = jnp.stack([ent_logit, max_logit, mean_logit, pm], axis=1)
    xn = (x - p["bn_mean"]) / jnp.sqrt(p["bn_var"] + eps) * p["bn_gamma"] + p["bn_beta"]
    h = jax.nn.sigmoid(xn @ p["w1"].T + p["b1"])
    y = h @ p["w2"].T + p["b2"]
    return jnp.maximum(y, 0.0)


# ----------------------------------------------------------------------------- main
if __name__ == "__main__":
    key = jax.random.PRNGKey(0)
    ks = jax.random.split(key, 9)
    u = lambda k, shape, scale=1.0: (jax.random.uniform(k, shape, jnp.float32) - 0.5) * 2 * scale

    # parameters (PyTorch layouts: Linear weight = (out_features, in_features))
    params = {
        # BatchNorm1d(4) eval-mode statistics + affine
        "bn_gamma": u(ks[0], (4,), 0.5) + 1.0,
        "bn_beta": u(ks[1], (4,), 0.2),
        "bn_mean": u(ks[2], (4,), 0.5),
        "bn_var": jax.random.uniform(ks[3], (4,), jnp.float32, 0.5, 1.5),
        # Linear(4, 4)
        "w1": u(ks[4], (4, 4), 0.5), "b1": u(ks[5], (4,), 0.1),
        # Linear(4, 2)
        "w2": u(ks[6], (2, 4), 0.5), "b2": u(ks[7], (2,), 0.1),
    }

    # B=2: the small spec-consistent case.  B=133: exercises the batch grid + masked partial tile.
    for B in (2, 133):
        kk = jax.random.split(jax.random.fold_in(ks[8], B), 4)
        ent_logit = u(kk[0], (B,))
        max_logit = u(kk[1], (B,))
        mean_logit = u(kk[2], (B,))
        pm = u(kk[3], (B,))

        out = jax.block_until_ready(
            backtrack_button(ent_logit, max_logit, mean_logit, pm, params))
        ref = jax.block_until_ready(
            reference(ent_logit, max_logit, mean_logit, pm, params))

        assert out.shape == (B, 2)
        np.testing.assert_allclose(np.asarray(out), np.asarray(ref), rtol=1e-4, atol=1e-5,
                                   err_msg=f"mismatch in BacktrackButton output at B={B}")

    print("KERNEL_OK")
</pallas_src>

<mosaic_0001>
module attributes {stable_mosaic.version = 11 : i64} {
  func.func @_backtrack_kernel(%arg0: i32, %arg1: memref<1x2xf32, #tpu.memory_space<vmem>>, %arg2: memref<1x2xf32, #tpu.memory_space<vmem>>, %arg3: memref<1x2xf32, #tpu.memory_space<vmem>>, %arg4: memref<1x2xf32, #tpu.memory_space<vmem>>, %arg5: memref<4x4xf32, #tpu.memory_space<smem>>, %arg6: memref<1x4xf32, #tpu.memory_space<smem>>, %arg7: memref<4x2xf32, #tpu.memory_space<smem>>, %arg8: memref<1x2xf32, #tpu.memory_space<smem>>, %arg9: memref<2x2xf32, #tpu.memory_space<vmem>>) attributes {dimension_semantics = [#tpu.dimension_semantics<parallel>], iteration_bounds = array<i64: 1>, scalar_prefetch = 0 : i64, scratch_operands = 0 : i64, tpu.core_type = #tpu.core_type<tc>, window_params = [{transform_indices = @transform_0, window_bounds = array<i64: 1, 2>}, {transform_indices = @transform_1, window_bounds = array<i64: 1, 2>}, {transform_indices = @transform_2, window_bounds = array<i64: 1, 2>}, {transform_indices = @transform_3, window_bounds = array<i64: 1, 2>}, {transform_indices = @transform_4, window_bounds = array<i64: 4, 4>}, {transform_indices = @transform_5, window_bounds = array<i64: 1, 4>}, {transform_indices = @transform_6, window_bounds = array<i64: 4, 2>}, {transform_indices = @transform_7, window_bounds = array<i64: 1, 2>}, {transform_indices = @transform_8, window_bounds = array<i64: 2, 2>}]} {
    %c0 = arith.constant 0 : index
    %c0_0 = arith.constant 0 : index
    %0 = vector.load %arg1[%c0, %c0_0] : memref<1x2xf32, #tpu.memory_space<vmem>>, vector<1x2xf32>
    %c0_1 = arith.constant 0 : index
    %c0_2 = arith.constant 0 : index
    %1 = vector.load %arg2[%c0_1, %c0_2] : memref<1x2xf32, #tpu.memory_space<vmem>>, vector<1x2xf32>
    %c0_3 = arith.constant 0 : index
    %c0_4 = arith.constant 0 : index
    %2 = vector.load %arg3[%c0_3, %c0_4] : memref<1x2xf32, #tpu.memory_space<vmem>>, vector<1x2xf32>
    %c0_5 = arith.constant 0 : index
    %c0_6 = arith.constant 0 : index
    %3 = vector.load %arg4[%c0_5, %c0_6] : memref<1x2xf32, #tpu.memory_space<vmem>>, vector<1x2xf32>
    %c0_7 = arith.constant 0 : index
    %c0_8 = arith.constant 0 : index
    %4 = memref.load %arg5[%c0_7, %c0_8] : memref<4x4xf32, #tpu.memory_space<smem>>
    %5 = vector.broadcast %4 : f32 to vector<1x2xf32>
    %6 = arith.mulf %0, %5 : vector<1x2xf32>
    %c0_9 = arith.constant 0 : index
    %c0_10 = arith.constant 0 : index
    %7 = memref.load %arg6[%c0_9, %c0_10] : memref<1x4xf32, #tpu.memory_space<smem>>
    %8 = vector.broadcast %7 : f32 to vector<1x2xf32>
    %9 = arith.addf %6, %8 : vector<1x2xf32>
    %c1 = arith.constant 1 : index
    %c0_11 = arith.constant 0 : index
    %10 = memref.load %arg5[%c1, %c0_11] : memref<4x4xf32, #tpu.memory_space<smem>>
    %11 = vector.broadcast %10 : f32 to vector<1x2xf32>
    %12 = arith.mulf %1, %11 : vector<1x2xf32>
    %13 = arith.addf %9, %12 : vector<1x2xf32>
    %c2 = arith.constant 2 : index
    %c0_12 = arith.constant 0 : index
    %14 = memref.load %arg5[%c2, %c0_12] : memref<4x4xf32, #tpu.memory_space<smem>>
    %15 = vector.broadcast %14 : f32 to vector<1x2xf32>
    %16 = arith.mulf %2, %15 : vector<1x2xf32>
    %17 = arith.addf %13, %16 : vector<1x2xf32>
    %c3 = arith.constant 3 : index
    %c0_13 = arith.constant 0 : index
    %18 = memref.load %arg5[%c3, %c0_13] : memref<4x4xf32, #tpu.memory_space<smem>>
    %19 = vector.broadcast %18 : f32 to vector<1x2xf32>
    %20 = arith.mulf %3, %19 : vector<1x2xf32>
    %21 = arith.addf %17, %20 : vector<1x2xf32>
    %22 = arith.negf %21 : vector<1x2xf32>
    %23 = math.exp %22 : vector<1x2xf32>
    %cst = arith.constant 1.000000e+00 : f32
    %24 = vector.broadcast %cst : f32 to vector<1x2xf32>
    %25 = arith.addf %24, %23 : vector<1x2xf32>
    %26 = arith.divf %24, %25 : vector<1x2xf32>
    %c0_14 = arith.constant 0 : index
    %c1_15 = arith.constant 1 : index
    %27 = memref.load %arg5[%c0_14, %c1_15] : memref<4x4xf32, #tpu.memory_space<smem>>
    %28 = vector.broadcast %27 : f32 to vector<1x2xf32>
    %29 = arith.mulf %0, %28 : vector<1x2xf32>
    %c0_16 = arith.constant 0 : index
    %c1_17 = arith.constant 1 : index
    %30 = memref.load %arg6[%c0_16, %c1_17] : memref<1x4xf32, #tpu.memory_space<smem>>
    %31 = vector.broadcast %30 : f32 to vector<1x2xf32>
    %32 = arith.addf %29, %31 : vector<1x2xf32>
    %c1_18 = arith.constant 1 : index
    %c1_19 = arith.constant 1 : index
    %33 = memref.load %arg5[%c1_18, %c1_19] : memref<4x4xf32, #tpu.memory_space<smem>>
    %34 = vector.broadcast %33 : f32 to vector<1x2xf32>
    %35 = arith.mulf %1, %34 : vector<1x2xf32>
    %36 = arith.addf %32, %35 : vector<1x2xf32>
    %c2_20 = arith.constant 2 : index
    %c1_21 = arith.constant 1 : index
    %37 = memref.load %arg5[%c2_20, %c1_21] : memref<4x4xf32, #tpu.memory_space<smem>>
    %38 = vector.broadcast %37 : f32 to vector<1x2xf32>
    %39 = arith.mulf %2, %38 : vector<1x2xf32>
    %40 = arith.addf %36, %39 : vector<1x2xf32>
    %c3_22 = arith.constant 3 : index
    %c1_23 = arith.constant 1 : index
    %41 = memref.load %arg5[%c3_22, %c1_23] : memref<4x4xf32, #tpu.memory_space<smem>>
    %42 = vector.broadcast %41 : f32 to vector<1x2xf32>
    %43 = arith.mulf %3, %42 : vector<1x2xf32>
    %44 = arith.addf %40, %43 : vector<1x2xf32>
    %45 = arith.negf %44 : vector<1x2xf32>
    %46 = math.exp %45 : vector<1x2xf32>
    %cst_24 = arith.constant 1.000000e+00 : f32
    %47 = vector.broadcast %cst_24 : f32 to vector<1x2xf32>
    %48 = arith.addf %47, %46 : vector<1x2xf32>
    %49 = arith.divf %47, %48 : vector<1x2xf32>
    %c0_25 = arith.constant 0 : index
    %c2_26 = arith.constant 2 : index
    %50 = memref.load %arg5[%c0_25, %c2_26] : memref<4x4xf32, #tpu.memory_space<smem>>
    %51 = vector.broadcast %50 : f32 to vector<1x2xf32>
    %52 = arith.mulf %0, %51 : vector<1x2xf32>
    %c0_27 = arith.constant 0 : index
    %c2_28 = arith.constant 2 : index
    %53 = memref.load %arg6[%c0_27, %c2_28] : memref<1x4xf32, #tpu.memory_space<smem>>
    %54 = vector.broadcast %53 : f32 to vector<1x2xf32>
    %55 = arith.addf %52, %54 : vector<1x2xf32>
    %c1_29 = arith.constant 1 : index
    %c2_30 = arith.constant 2 : index
    %56 = memref.load %arg5[%c1_29, %c2_30] : memref<4x4xf32, #tpu.memory_space<smem>>
    %57 = vector.broadcast %56 : f32 to vector<1x2xf32>
    %58 = arith.mulf %1, %57 : vector<1x2xf32>
    %59 = arith.addf %55, %58 : vector<1x2xf32>
    %c2_31 = arith.constant 2 : index
    %c2_32 = arith.constant 2 : index
    %60 = memref.load %arg5[%c2_31, %c2_32] : memref<4x4xf32, #tpu.memory_space<smem>>
    %61 = vector.broadcast %60 : f32 to vector<1x2xf32>
    %62 = arith.mulf %2, %61 : vector<1x2xf32>
    %63 = arith.addf %59, %62 : vector<1x2xf32>
    %c3_33 = arith.constant 3 : index
    %c2_34 = arith.constant 2 : index
    %64 = memref.load %arg5[%c3_33, %c2_34] : memref<4x4xf32, #tpu.memory_space<smem>>
    %65 = vector.broadcast %64 : f32 to vector<1x2xf32>
    %66 = arith.mulf %3, %65 : vector<1x2xf32>
    %67 = arith.addf %63, %66 : vector<1x2xf32>
    %68 = arith.negf %67 : vector<1x2xf32>
    %69 = math.exp %68 : vector<1x2xf32>
    %cst_35 = arith.constant 1.000000e+00 : f32
    %70 = vector.broadcast %cst_35 : f32 to vector<1x2xf32>
    %71 = arith.addf %70, %69 : vector<1x2xf32>
    %72 = arith.divf %70, %71 : vector<1x2xf32>
    %c0_36 = arith.constant 0 : index
    %c3_37 = arith.constant 3 : index
    %73 = memref.load %arg5[%c0_36, %c3_37] : memref<4x4xf32, #tpu.memory_space<smem>>
    %74 = vector.broadcast %73 : f32 to vector<1x2xf32>
    %75 = arith.mulf %0, %74 : vector<1x2xf32>
    %c0_38 = arith.constant 0 : index
    %c3_39 = arith.constant 3 : index
    %76 = memref.load %arg6[%c0_38, %c3_39] : memref<1x4xf32, #tpu.memory_space<smem>>
    %77 = vector.broadcast %76 : f32 to vector<1x2xf32>
    %78 = arith.addf %75, %77 : vector<1x2xf32>
    %c1_40 = arith.constant 1 : index
    %c3_41 = arith.constant 3 : index
    %79 = memref.load %arg5[%c1_40, %c3_41] : memref<4x4xf32, #tpu.memory_space<smem>>
    %80 = vector.broadcast %79 : f32 to vector<1x2xf32>
    %81 = arith.mulf %1, %80 : vector<1x2xf32>
    %82 = arith.addf %78, %81 : vector<1x2xf32>
    %c2_42 = arith.constant 2 : index
    %c3_43 = arith.constant 3 : index
    %83 = memref.load %arg5[%c2_42, %c3_43] : memref<4x4xf32, #tpu.memory_space<smem>>
    %84 = vector.broadcast %83 : f32 to vector<1x2xf32>
    %85 = arith.mulf %2, %84 : vector<1x2xf32>
    %86 = arith.addf %82, %85 : vector<1x2xf32>
    %c3_44 = arith.constant 3 : index
    %c3_45 = arith.constant 3 : index
    %87 = memref.load %arg5[%c3_44, %c3_45] : memref<4x4xf32, #tpu.memory_space<smem>>
    %88 = vector.broadcast %87 : f32 to vector<1x2xf32>
    %89 = arith.mulf %3, %88 : vector<1x2xf32>
    %90 = arith.addf %86, %89 : vector<1x2xf32>
    %91 = arith.negf %90 : vector<1x2xf32>
    %92 = math.exp %91 : vector<1x2xf32>
    %cst_46 = arith.constant 1.000000e+00 : f32
    %93 = vector.broadcast %cst_46 : f32 to vector<1x2xf32>
    %94 = arith.addf %93, %92 : vector<1x2xf32>
    %95 = arith.divf %93, %94 : vector<1x2xf32>
    %c0_47 = arith.constant 0 : index
    %c0_48 = arith.constant 0 : index
    %96 = memref.load %arg7[%c0_47, %c0_48] : memref<4x2xf32, #tpu.memory_space<smem>>
    %97 = vector.broadcast %96 : f32 to vector<1x2xf32>
    %98 = arith.mulf %26, %97 : vector<1x2xf32>
    %c0_49 = arith.constant 0 : index
    %c0_50 = arith.constant 0 : index
    %99 = memref.load %arg8[%c0_49, %c0_50] : memref<1x2xf32, #tpu.memory_space<smem>>
    %100 = vector.broadcast %99 : f32 to vector<1x2xf32>
    %101 = arith.addf %98, %100 : vector<1x2xf32>
    %c1_51 = arith.constant 1 : index
    %c0_52 = arith.constant 0 : index
    %102 = memref.load %arg7[%c1_51, %c0_52] : memref<4x2xf32, #tpu.memory_space<smem>>
    %103 = vector.broadcast %102 : f32 to vector<1x2xf32>
    %104 = arith.mulf %49, %103 : vector<1x2xf32>
    %105 = arith.addf %101, %104 : vector<1x2xf32>
    %c2_53 = arith.constant 2 : index
    %c0_54 = arith.constant 0 : index
    %106 = memref.load %arg7[%c2_53, %c0_54] : memref<4x2xf32, #tpu.memory_space<smem>>
    %107 = vector.broadcast %106 : f32 to vector<1x2xf32>
    %108 = arith.mulf %72, %107 : vector<1x2xf32>
    %109 = arith.addf %105, %108 : vector<1x2xf32>
    %c3_55 = arith.constant 3 : index
    %c0_56 = arith.constant 0 : index
    %110 = memref.load %arg7[%c3_55, %c0_56] : memref<4x2xf32, #tpu.memory_space<smem>>
    %111 = vector.broadcast %110 : f32 to vector<1x2xf32>
    %112 = arith.mulf %95, %111 : vector<1x2xf32>
    %113 = arith.addf %109, %112 : vector<1x2xf32>
    %cst_57 = arith.constant 0.000000e+00 : f32
    %114 = vector.broadcast %cst_57 : f32 to vector<1x2xf32>
    %115 = arith.maximumf %113, %114 : vector<1x2xf32>
    %c0_58 = arith.constant 0 : index
    %c0_59 = arith.constant 0 : index
    %116 = vector.load %arg9[%c0_58, %c0_59] : memref<2x2xf32, #tpu.memory_space<vmem>>, vector<1x2xf32>
    tpu.vector_store %arg9[%c0_58, %c0_59], %115 {strides = array<i32>} : memref<2x2xf32, #tpu.memory_space<vmem>>, vector<1x2xf32>,
    %c0_60 = arith.constant 0 : index
    %c1_61 = arith.constant 1 : index
    %117 = memref.load %arg7[%c0_60, %c1_61] : memref<4x2xf32, #tpu.memory_space<smem>>
    %118 = vector.broadcast %117 : f32 to vector<1x2xf32>
    %119 = arith.mulf %26, %118 : vector<1x2xf32>
    %c0_62 = arith.constant 0 : index
    %c1_63 = arith.constant 1 : index
    %120 = memref.load %arg8[%c0_62, %c1_63] : memref<1x2xf32, #tpu.memory_space<smem>>
    %121 = vector.broadcast %120 : f32 to vector<1x2xf32>
    %122 = arith.addf %119, %121 : vector<1x2xf32>
    %c1_64 = arith.constant 1 : index
    %c1_65 = arith.constant 1 : index
    %123 = memref.load %arg7[%c1_64, %c1_65] : memref<4x2xf32, #tpu.memory_space<smem>>
    %124 = vector.broadcast %123 : f32 to vector<1x2xf32>
    %125 = arith.mulf %49, %124 : vector<1x2xf32>
    %126 = arith.addf %122, %125 : vector<1x2xf32>
    %c2_66 = arith.constant 2 : index
    %c1_67 = arith.constant 1 : index
    %127 = memref.load %arg7[%c2_66, %c1_67] : memref<4x2xf32, #tpu.memory_space<smem>>
    %128 = vector.broadcast %127 : f32 to vector<1x2xf32>
    %129 = arith.mulf %72, %128 : vector<1x2xf32>
    %130 = arith.addf %126, %129 : vector<1x2xf32>
    %c3_68 = arith.constant 3 : index
    %c1_69 = arith.constant 1 : index
    %131 = memref.load %arg7[%c3_68, %c1_69] : memref<4x2xf32, #tpu.memory_space<smem>>
    %132 = vector.broadcast %131 : f32 to vector<1x2xf32>
    %133 = arith.mulf %95, %132 : vector<1x2xf32>
    %134 = arith.addf %130, %133 : vector<1x2xf32>
    %cst_70 = arith.constant 0.000000e+00 : f32
    %135 = vector.broadcast %cst_70 : f32 to vector<1x2xf32>
    %136 = arith.maximumf %134, %135 : vector<1x2xf32>
    %c1_71 = arith.constant 1 : index
    %c0_72 = arith.constant 0 : index
    %137 = vector.load %arg9[%c1_71, %c0_72] : memref<2x2xf32, #tpu.memory_space<vmem>>, vector<1x2xf32>
    tpu.vector_store %arg9[%c1_71, %c0_72], %136 {strides = array<i32>} : memref<2x2xf32, #tpu.memory_space<vmem>>, vector<1x2xf32>,
    return
  }
  func.func @transform_0(%arg0: i32) -> (i32, i32) {
    %c0_i32 = arith.constant 0 : i32
    %c0_i32_0 = arith.constant 0 : i32
    return %c0_i32, %arg0 : i32, i32
  }
  func.func @transform_1(%arg0: i32) -> (i32, i32) {
    %c0_i32 = arith.constant 0 : i32
    %c0_i32_0 = arith.constant 0 : i32
    return %c0_i32, %arg0 : i32, i32
  }
  func.func @transform_2(%arg0: i32) -> (i32, i32) {
    %c0_i32 = arith.constant 0 : i32
    %c0_i32_0 = arith.constant 0 : i32
    return %c0_i32, %arg0 : i32, i32
  }
  func.func @transform_3(%arg0: i32) -> (i32, i32) {
    %c0_i32 = arith.constant 0 : i32
    %c0_i32_0 = arith.constant 0 : i32
    return %c0_i32, %arg0 : i32, i32
  }
  func.func @transform_4(%arg0: i32) -> (i32, i32) {
    %c0_i32 = arith.constant 0 : i32
    %c0_i32_0 = arith.constant 0 : i32
    %c0_i32_1 = arith.constant 0 : i32
    return %c0_i32, %c0_i32_0 : i32, i32
  }
  func.func @transform_5(%arg0: i32) -> (i32, i32) {
    %c0_i32 = arith.constant 0 : i32
    %c0_i32_0 = arith.constant 0 : i32
    %c0_i32_1 = arith.constant 0 : i32
    return %c0_i32, %c0_i32_0 : i32, i32
  }
  func.func @transform_6(%arg0: i32) -> (i32, i32) {
    %c0_i32 = arith.constant 0 : i32
    %c0_i32_0 = arith.constant 0 : i32
    %c0_i32_1 = arith.constant 0 : i32
    return %c0_i32, %c0_i32_0 : i32, i32
  }
  func.func @transform_7(%arg0: i32) -> (i32, i32) {
    %c0_i32 = arith.constant 0 : i32
    %c0_i32_0 = arith.constant 0 : i32
    %c0_i32_1 = arith.constant 0 : i32
    return %c0_i32, %c0_i32_0 : i32, i32
  }
  func.func @transform_8(%arg0: i32) -> (i32, i32) {
    %c0_i32 = arith.constant 0 : i32
    %c0_i32_0 = arith.constant 0 : i32
    return %c0_i32, %arg0 : i32, i32
  }
}

</mosaic_0001>

<llo_original>
// kernel: tpu_custom_call.1
$region0: #{tpu_custom_call.1}
  #allocation0 [shape = 'u32[]', space=smem, size = 0x4, offset = 0x4, fixed_abs, tag = 'smem constant byte address 0x4 - core index']
  #allocation1 [shape = 'u32[144,128]{1,0:T(1,128)}', space=vmem, size = 0x12000, scoped, tag = 'internal scratch']
  %s0 = inlined_call_operand.vmem [shape: f32[1,2], index: 0, kind: input, shape index: {}]
  %s1 = inlined_call_operand.vmem [shape: f32[1,2], index: 1, kind: input, shape index: {}]
  %s2 = inlined_call_operand.vmem [shape: f32[1,2], index: 2, kind: input, shape index: {}]
  %s3 = inlined_call_operand.vmem [shape: f32[1,2], index: 3, kind: input, shape index: {}]
  %s4 = inlined_call_operand.vmem [shape: f32[4,4], index: 4, kind: input, shape index: {}]
  %s5 = inlined_call_operand.vmem [shape: f32[1,4], index: 5, kind: input, shape index: {}]
  %s6 = inlined_call_operand.vmem [shape: f32[4,2], index: 6, kind: input, shape index: {}]
  %s7 = inlined_call_operand.vmem [shape: f32[1,2], index: 7, kind: input, shape index: {}]
  %s8 = inlined_call_operand.hbm [shape: f32[2,2], index: 8, kind: output, shape index: {}]
  %s9 = sld [smem:[#allocation0]]
  $region58: #{tpu_custom_call.1} parent=0
    _
  %s11 = ssub.s32 1, %s9
  %s12 = scalar_select 0, %s11, %s9
  $region1: #{tpu_custom_call.1} parent=0
    #allocation2 [shape = 'u8[2048]{0}', space=smem, size = 0x800, scoped, tag = 'input window, operand 4, single buffered']
    #allocation3 [shape = 's32[1]{0}', space=sflag, size = 0x4, scoped, tag = 'scoped memory for tpu_custom_call.1']
    #allocation4 [shape = 's32[1]{0}', space=sflag, size = 0x4, scoped, tag = 'scoped memory for tpu_custom_call.1']
    #allocation5 [shape = 'u8[512]{0}', space=smem, size = 0x200, scoped, tag = 'input window, operand 5, single buffered']
    #allocation6 [shape = 's32[1]{0}', space=sflag, size = 0x4, scoped, tag = 'scoped memory for tpu_custom_call.1']
    #allocation7 [shape = 'u8[2048]{0}', space=smem, size = 0x800, scoped, tag = 'input window, operand 6, single buffered']
    #allocation8 [shape = 'u8[512]{0}', space=smem, size = 0x200, scoped, tag = 'input window, operand 7, single buffered']
    #allocation9 [shape = 's32[1]{0}', space=sflag, size = 0x4, scoped, tag = 'scoped memory for tpu_custom_call.1']
    #allocation10 [shape = 'u8[1024]{0}', space=vmem, size = 0x400, scoped, tag = 'output window, operand 0, single buffered']
    %13 = vsyncpa [#allocation4], 0
    %14 = vsyncpa [#allocation6], 0
    %15 = vsyncpa [#allocation9], 0
    %16 = vsyncpa [#allocation3], 0
    // Predicated region
    $region2: #{tpu_custom_call.1} parent=1 // pred_check
      _
    $region3: #{tpu_custom_call.1} parent=1 // pred_check_branch
      %18 = sbr.rel (0) target = $region5
    $region4: #{tpu_custom_call.1} parent=1 // pred_region
      _
    $region5: #{tpu_custom_call.1} parent=1 // pred_fallthru
      _
    // Predicated region
    $region6: #{tpu_custom_call.1} parent=1 // pred_check
      _
    $region7: #{tpu_custom_call.1} parent=1 // pred_check_branch
      %20 = sbr.rel (0) target = $region9
    $region8: #{tpu_custom_call.1} parent=1 // pred_region
      _
    $region9: #{tpu_custom_call.1} parent=1 // pred_fallthru
      _
    // Predicated region
    $region10: #{tpu_custom_call.1} parent=1 // pred_check
      _
    $region11: #{tpu_custom_call.1} parent=1 // pred_check_branch
      %22 = sbr.rel (0) target = $region13
    $region12: #{tpu_custom_call.1} parent=1 // pred_region
      _
    $region13: #{tpu_custom_call.1} parent=1 // pred_fallthru
      _
    // Predicated region
    $region14: #{tpu_custom_call.1} parent=1 // pred_check
      _
    $region15: #{tpu_custom_call.1} parent=1 // pred_check_branch
      %24 = sbr.rel (0) target = $region17
    $region16: #{tpu_custom_call.1} parent=1 // pred_region
      _
    $region17: #{tpu_custom_call.1} parent=1 // pred_fallthru
      _
    // Predicated region
    $region18: #{tpu_custom_call.1} parent=1 // pred_check
      _
    $region19: #{tpu_custom_call.1} parent=1 // pred_check_branch
      %26 = sbr.rel (0) target = $region21
    $region20: #{tpu_custom_call.1} parent=1 // pred_region
      %s28 = ssub.s32 64, 64
      %29 = vsyncadd [#allocation4], %s28
      %s31 = sshll.u32 %s4, 4
      %s32 = int_to_ptr.vmem [resolvable:$true] %s31
      %34 = dma.vmem_to_smem %s32, 64, [#allocation2], [#allocation4]
    $region21: #{tpu_custom_call.1} parent=1 // pred_fallthru
      _
    // Predicated region
    $region22: #{tpu_custom_call.1} parent=1 // pred_check
      _
    $region23: #{tpu_custom_call.1} parent=1 // pred_check_branch
      %36 = sbr.rel (0) target = $region25
    $region24: #{tpu_custom_call.1} parent=1 // pred_region
      %s38 = ssub.s32 16, 16
      %39 = vsyncadd [#allocation6], %s38
      %s41 = sshll.u32 %s5, 4
      %s42 = int_to_ptr.vmem [resolvable:$true] %s41
      %44 = dma.vmem_to_smem %s42, 16, [#allocation5], [#allocation6]
    $region25: #{tpu_custom_call.1} parent=1 // pred_fallthru
      _
    // Predicated region
    $region26: #{tpu_custom_call.1} parent=1 // pred_check
      _
    $region27: #{tpu_custom_call.1} parent=1 // pred_check_branch
      %46 = sbr.rel (0) target = $region29
    $region28: #{tpu_custom_call.1} parent=1 // pred_region
      %s48 = ssub.s32 64, 64
      %49 = vsyncadd [#allocation6], %s48
      %s51 = sshll.u32 %s6, 4
      %s52 = int_to_ptr.vmem [resolvable:$true] %s51
      %54 = dma.vmem_to_smem %s52, 64, [#allocation7], [#allocation6]
    $region29: #{tpu_custom_call.1} parent=1 // pred_fallthru
      _
    // Predicated region
    $region30: #{tpu_custom_call.1} parent=1 // pred_check
      _
    $region31: #{tpu_custom_call.1} parent=1 // pred_check_branch
      %56 = sbr.rel (0) target = $region33
    $region32: #{tpu_custom_call.1} parent=1 // pred_region
      %s58 = ssub.s32 16, 16
      %59 = vsyncadd [#allocation9], %s58
      %s61 = sshll.u32 %s7, 4
      %s62 = int_to_ptr.vmem [resolvable:$true] %s61
      %64 = dma.vmem_to_smem %s62, 16, [#allocation8], [#allocation9]
    $region33: #{tpu_custom_call.1} parent=1 // pred_fallthru
      _
    // Predicated region
    $region34: #{tpu_custom_call.1} parent=1 // pred_check
      _
    $region35: #{tpu_custom_call.1} parent=1 // pred_check_branch
      %66 = sbr.rel (0) target = $region37
    $region36: #{tpu_custom_call.1} parent=1 // pred_region
      %67 = dma.done [#allocation4], 64
    $region37: #{tpu_custom_call.1} parent=1 // pred_fallthru
      _
    // Predicated region
    $region38: #{tpu_custom_call.1} parent=1 // pred_check
      _
    $region39: #{tpu_custom_call.1} parent=1 // pred_check_branch
      %69 = sbr.rel (0) target = $region41
    $region40: #{tpu_custom_call.1} parent=1 // pred_region
      %70 = dma.done [#allocation6], 16
    $region41: #{tpu_custom_call.1} parent=1 // pred_fallthru
      _
    // Predicated region
    $region42: #{tpu_custom_call.1} parent=1 // pred_check
      _
    $region43: #{tpu_custom_call.1} parent=1 // pred_check_branch
      %72 = sbr.rel (0) target = $region45
    $region44: #{tpu_custom_call.1} parent=1 // pred_region
      %73 = dma.done [#allocation6], 64
    $region45: #{tpu_custom_call.1} parent=1 // pred_fallthru
      _
    // Predicated region
    $region46: #{tpu_custom_call.1} parent=1 // pred_check
      _
    $region47: #{tpu_custom_call.1} parent=1 // pred_check_branch
      %75 = sbr.rel (0) target = $region49
    $region48: #{tpu_custom_call.1} parent=1 // pred_region
      %76 = dma.done [#allocation9], 16
    $region49: #{tpu_custom_call.1} parent=1 // pred_fallthru
      _
    %77 = sfence
    %v78 = vld [vmem:[%s0] sm:$0x1]
    %v79 = vld [vmem:[%s1] sm:$0x1]
    %v80 = vld [vmem:[%s2] sm:$0x1]
    %v81 = vld [vmem:[%s3] sm:$0x1]
    %s82 = sld [smem:[#allocation2]]
    %v83 = vstv %s82
    %v84 = vmul.f32 %v78, %v83
    %s85 = sld [smem:[#allocation5]]
    %v86 = vstv %s85
    %v87 = vadd.f32 %v84, %v86
    %s88 = sld [smem:[#allocation2 + $0x80]]
    %v89 = vstv %s88
    %v90 = vmul.f32 %v79, %v89
    %v91 = vadd.f32 %v87, %v90
    %s92 = sld [smem:[#allocation2 + $0x100]]
    %v93 = vstv %s92
    %v94 = vmul.f32 %v80, %v93
    %v95 = vadd.f32 %v91, %v94
    %s96 = sld [smem:[#allocation2 + $0x180]]
    %v97 = vstv %s96
    %v98 = vmul.f32 %v81, %v97
    %v99 = vadd.f32 %v95, %v98
    %v100 = vxor.u32 %v99, 2147483648
    %v101 = vmul.f32 %v100, 1.442695
    %v102 = vpow.pop %v101
    %v103 = vadd.f32 %v102, 1.0
    %v104 = vrcp.pop %v103
    %v105 = vmul.f32 1.0, %v104
    %s106 = sld [smem:[#allocation2 + $0x1]]
    %v107 = vstv %s106
    %v108 = vmul.f32 %v78, %v107
    %s109 = sld [smem:[#allocation5 + $0x1]]
    %v110 = vstv %s109
    %v111 = vadd.f32 %v108, %v110
    %s112 = sld [smem:[#allocation2 + $0x81]]
    %v113 = vstv %s112
    %v114 = vmul.f32 %v79, %v113
    %v115 = vadd.f32 %v111, %v114
    %s116 = sld [smem:[#allocation2 + $0x101]]
    %v117 = vstv %s116
    %v118 = vmul.f32 %v80, %v117
    %v119 = vadd.f32 %v115, %v118
    %s120 = sld [smem:[#allocation2 + $0x181]]
    %v121 = vstv %s120
    %v122 = vmul.f32 %v81, %v121
    %v123 = vadd.f32 %v119, %v122
    %v124 = vxor.u32 %v123, 2147483648
    %v125 = vmul.f32 %v124, 1.442695
    %v126 = vpow.pop %v125
    %v127 = vadd.f32 %v126, 1.0
    %v128 = vrcp.pop %v127
    %v129 = vmul.f32 1.0, %v128
    %s130 = sld [smem:[#allocation2 + $0x2]]
    %v131 = vstv %s130
    %v132 = vmul.f32 %v78, %v131
    %s133 = sld [smem:[#allocation5 + $0x2]]
    %v134 = vstv %s133
    %v135 = vadd.f32 %v132, %v134
    %s136 = sld [smem:[#allocation2 + $0x82]]
    %v137 = vstv %s136
    %v138 = vmul.f32 %v79, %v137
    %v139 = vadd.f32 %v135, %v138
    %s140 = sld [smem:[#allocation2 + $0x102]]
    %v141 = vstv %s140
    %v142 = vmul.f32 %v80, %v141
    %v143 = vadd.f32 %v139, %v142
    %s144 = sld [smem:[#allocation2 + $0x182]]
    %v145 = vstv %s144
    %v146 = vmul.f32 %v81, %v145
    %v147 = vadd.f32 %v143, %v146
    %v148 = vxor.u32 %v147, 2147483648
    %v149 = vmul.f32 %v148, 1.442695
    %v150 = vpow.pop %v149
    %v151 = vadd.f32 %v150, 1.0
    %v152 = vrcp.pop %v151
    %v153 = vmul.f32 1.0, %v152
    %s154 = sld [smem:[#allocation2 + $0x3]]
    %v155 = vstv %s154
    %v156 = vmul.f32 %v78, %v155
    %s157 = sld [smem:[#allocation5 + $0x3]]
    %v158 = vstv %s157
    %v159 = vadd.f32 %v156, %v158
    %s160 = sld [smem:[#allocation2 + $0x83]]
    %v161 = vstv %s160
    %v162 = vmul.f32 %v79, %v161
    %v163 = vadd.f32 %v159, %v162
    %s164 = sld [smem:[#allocation2 + $0x103]]
    %v165 = vstv %s164
    %v166 = vmul.f32 %v80, %v165
    %v167 = vadd.f32 %v163, %v166
    %s168 = sld [smem:[#allocation2 + $0x183]]
    %v169 = vstv %s168
    %v170 = vmul.f32 %v81, %v169
    %v171 = vadd.f32 %v167, %v170
    %v172 = vxor.u32 %v171, 2147483648
    %v173 = vmul.f32 %v172, 1.442695
    %v174 = vpow.pop %v173
    %v175 = vadd.f32 %v174, 1.0
    %v176 = vrcp.pop %v175
    %v177 = vmul.f32 1.0, %v176
    %s178 = sld [smem:[#allocation7]]
    %v179 = vstv %s178
    %v180 = vmul.f32 %v105, %v179
    %s181 = sld [smem:[#allocation8]]
    %v182 = vstv %s181
    %v183 = vadd.f32 %v180, %v182
    %s184 = sld [smem:[#allocation7 + $0x80]]
    %v185 = vstv %s184
    %v186 = vmul.f32 %v129, %v185
    %v187 = vadd.f32 %v183, %v186
    %s188 = sld [smem:[#allocation7 + $0x100]]
    %v189 = vstv %s188
    %v190 = vmul.f32 %v153, %v189
    %v191 = vadd.f32 %v187, %v190
    %s192 = sld [smem:[#allocation7 + $0x180]]
    %v193 = vstv %s192
    %v194 = vmul.f32 %v177, %v193
    %v195 = vadd.f32 %v191, %v194
    %v196 = vmax.f32 %v195, 0.0
    %vm197 = vcmask 8192
    %198 = vst.msk [vmem:[#allocation10] sm:$0x1] %vm197, %v196
    %s199 = sld [smem:[#allocation7 + $0x1]]
    %v200 = vstv %s199
    %v201 = vmul.f32 %v105, %v200
    %s202 = sld [smem:[#allocation8 + $0x1]]
    %v203 = vstv %s202
    %v204 = vadd.f32 %v201, %v203
    %s205 = sld [smem:[#allocation7 + $0x81]]
    %v206 = vstv %s205
    %v207 = vmul.f32 %v129, %v206
    %v208 = vadd.f32 %v204, %v207
    %s209 = sld [smem:[#allocation7 + $0x101]]
    %v210 = vstv %s209
    %v211 = vmul.f32 %v153, %v210
    %v212 = vadd.f32 %v208, %v211
    %s213 = sld [smem:[#allocation7 + $0x181]]
    %v214 = vstv %s213
    %v215 = vmul.f32 %v177, %v214
    %v216 = vadd.f32 %v212, %v215
    %v217 = vmax.f32 %v216, 0.0
    %218 = vst.msk [vmem:[#allocation10 + $0x1] sm:$0x1] %vm197, %v217
    // Predicated region
    $region50: #{tpu_custom_call.1} parent=1 // pred_check
      _
    $region51: #{tpu_custom_call.1} parent=1 // pred_check_branch
      %220 = sbr.rel (0) target = $region53
    $region52: #{tpu_custom_call.1} parent=1 // pred_region
      %s222 = ssub.s32 32, 32
      %223 = vsyncadd [#allocation3], %s222
      %s225 = sshll.u32 [#allocation10], 4
      %s226 = int_to_ptr.vmem [resolvable:$true] %s225
      %228 = dma.vmem_to_hbm [thread:$0]  %s226, 32, %s8, [#allocation3]
    $region53: #{tpu_custom_call.1} parent=1 // pred_fallthru
      _
    // Predicated region
    $region54: #{tpu_custom_call.1} parent=1 // pred_check
      _
    $region55: #{tpu_custom_call.1} parent=1 // pred_check_branch
      %230 = sbr.rel (0) target = $region57
    $region56: #{tpu_custom_call.1} parent=1 // pred_region
      %231 = dma.done [#allocation3], 32
    $region57: #{tpu_custom_call.1} parent=1 // pred_fallthru
      _
    %232 = vsyncpa [#allocation3], 1
    %233 = vsyncpa [#allocation4], 1
    %234 = vsyncpa [#allocation6], 1
    %235 = vsyncpa [#allocation9], 1

</llo_original>
